<compile_context>
chip_gen: v5e
topology: v5e:2x2
jax: 0.10.0
libtpu: 0.0.40
codegen_flags: <defaults>
</compile_context>

<pallas_src>
import numpy as np
import jax
import jax.numpy as jnp
from jax import lax
from jax.experimental import pallas as pl
from jax.experimental.pallas import tpu as pltpu


def _pixelcnn_mask_b(k):
    m = np.zeros((k, k), dtype=bool)
    m[: k // 2, :] = True
    m[k // 2, : k // 2 + 1] = True
    return m


def _round_up(n, m):
    return (n + m - 1) // m * m


def _tap_masks(H, W, K, taps):
    """Per-tap validity masks over the flattened HW axis (host precomputed)."""
    pad = K // 2
    ys, xs = np.meshgrid(np.arange(H), np.arange(W), indexing="ij")
    ys, xs = ys.reshape(-1), xs.reshape(-1)
    rows = []
    for dy, dx in taps:
        oy, ox = dy - pad, dx - pad
        valid = (ys + oy >= 0) & (ys + oy < H) & (xs + ox >= 0) & (xs + ox < W)
        rows.append(valid.astype(np.float32))
    return np.stack(rows, axis=0)  # (n_taps, HW)


def _make_kernel(H, W, K, taps):
    HW = H * W
    pad = K // 2

    def kernel(x_ref, mask_ref, s1_ref, t1_ref, w1_ref, b1_ref,
               w2_ref, b2_ref, w3_ref, b3_ref, o_ref):
        x = x_ref[0]                                            # (C, HW) lane-dense

        # bn1 -> relu
        a = jnp.maximum(x * s1_ref[...] + t1_ref[...], 0.0)

        # conv1 (1x1) with bn2 folded in, then relu:  (Cip, C) @ (C, HW)
        h = jnp.maximum(
            jnp.dot(w1_ref[...], a, preferred_element_type=jnp.float32)
            + b1_ref[...], 0.0)                                 # (Cip, HW)

        # Masked KxK conv: all taps fused into ONE matmul.  Each tap is a
        # static lane roll (XLU) of h along the flattened HW axis; boundary
        # validity comes from precomputed multiplicative masks.
        pieces = []
        for t, (dy, dx) in enumerate(taps):
            off = (dy - pad) * W + (dx - pad)
            if off == 0:
                pieces.append(h)                                # center tap
            else:
                sl = pltpu.roll(h, shift=(-off) % HW, axis=1)
                pieces.append(sl * mask_ref[pl.ds(t, 1), :])    # (1,HW) broadcast
        acat = jnp.concatenate(pieces, axis=0)                  # (n_taps*Cip, HW)

        # fused masked conv (+ folded bn3), then relu
        g = jnp.maximum(
            jnp.dot(w2_ref[...], acat, preferred_element_type=jnp.float32)
            + b2_ref[...], 0.0)                                 # (Cip, HW)

        # conv3 (1x1) + residual
        o_ref[0] = (jnp.dot(w3_ref[...], g, preferred_element_type=jnp.float32)
                    + b3_ref[...] + x)

    return kernel


def _fold_params(params, C, Ci, taps):
    """Fold bn2 into conv1, bn3 into conv2; pad inner channels to 8 sublanes."""
    Cip = _round_up(Ci, 8)
    n_taps = len(taps)

    s1 = params["s1"].reshape(C, 1)
    t1 = params["t1"].reshape(C, 1)
    s2, t2 = params["s2"].reshape(Ci), params["t2"].reshape(Ci)
    s3, t3 = params["s3"].reshape(Ci), params["t3"].reshape(Ci)

    # conv1 (out=Ci, in=C) with bn2 folded; pad output rows to Cip.
    w1, b1 = params["w1"], params["b1"].reshape(Ci)
    w1f = jnp.zeros((Cip, C), jnp.float32).at[:Ci, :].set(s2[:, None] * w1)
    b1f = jnp.zeros((Cip, 1), jnp.float32).at[:Ci, 0].set(s2 * b1 + t2)

    # masked conv2: per-tap (out,in) blocks with bn3 folded, concatenated
    # along the contraction axis in the same order the kernel concatenates
    # its shifted activations.
    w2, b2 = params["w2_hwio"], params["b2"].reshape(Ci)        # (K,K,in,out)
    w2f = jnp.zeros((Cip, n_taps * Cip), jnp.float32)
    for t, (dy, dx) in enumerate(taps):
        blk = s3[:, None] * w2[dy, dx].T                        # (out, in)
        w2f = w2f.at[:Ci, t * Cip:t * Cip + Ci].set(blk)
    b2f = jnp.zeros((Cip, 1), jnp.float32).at[:Ci, 0].set(s3 * b2 + t3)

    # conv3 (out=C, in=Ci) padded to Cip input columns.
    w3 = params["w3"]
    w3f = jnp.zeros((C, Cip), jnp.float32).at[:, :Ci].set(w3)
    b3 = params["b3"].reshape(C, 1)

    return dict(s1=s1, t1=t1, w1f=w1f, b1f=b1f, w2f=w2f, b2f=b2f,
                w3f=w3f, b3=b3)


def residual_block_pallas(x_nchw, params, K, mask):
    B, C, H, W = x_nchw.shape
    Ci = params["w1"].shape[0]
    Cip = _round_up(Ci, 8)
    HW = H * W
    taps = [(dy, dx) for dy in range(K) for dx in range(K) if mask[dy, dx]]
    n_taps = len(taps)

    x = x_nchw.reshape(B, C, HW)                       # free reshape, no transpose
    tap_masks = jnp.asarray(_tap_masks(H, W, K, taps))  # (n_taps, HW) f32
    fp = _fold_params(params, C, Ci, taps)

    kernel = _make_kernel(H, W, K, taps)

    def full(*shape):
        return pl.BlockSpec(shape, lambda b, _n=len(shape): (0,) * _n)

    out = pl.pallas_call(
        kernel,
        out_shape=jax.ShapeDtypeStruct((B, C, HW), jnp.float32),
        grid_spec=pltpu.PrefetchScalarGridSpec(
            num_scalar_prefetch=0,
            grid=(B,),
            in_specs=[
                pl.BlockSpec((1, C, HW), lambda b: (b, 0, 0)),   # x  (lane-dense)
                full(n_taps, HW),                                # tap boundary masks
                full(C, 1), full(C, 1),                          # bn1 scale/shift
                full(Cip, C), full(Cip, 1),                      # conv1 (+bn2 folded)
                full(Cip, n_taps * Cip), full(Cip, 1),           # masked conv2 (+bn3)
                full(C, Cip), full(C, 1),                        # conv3 w/b
            ],
            out_specs=pl.BlockSpec((1, C, HW), lambda b: (b, 0, 0)),
        ),
        compiler_params=pltpu.CompilerParams(dimension_semantics=("parallel",)),
    )(x, tap_masks, fp["s1"], fp["t1"], fp["w1f"], fp["b1f"],
      fp["w2f"], fp["b2f"], fp["w3f"], fp["b3"])

    return out.reshape(B, C, H, W)


def init_params(key, C, K, reduction=2):
    Ci = C // reduction
    ks = list(jax.random.split(key, 8))

    def bn(k, n):
        k1, k2, k3, k4 = jax.random.split(k, 4)
        gamma = jax.random.uniform(k1, (n,), minval=0.5, maxval=1.5)
        beta = 0.1 * jax.random.normal(k2, (n,))
        mean = 0.1 * jax.random.normal(k3, (n,))
        var = jax.random.uniform(k4, (n,), minval=0.5, maxval=1.5)
        scale = gamma / jnp.sqrt(var + 1e-5)
        shift = beta - mean * scale
        return scale.astype(jnp.float32), shift.astype(jnp.float32)

    s1, t1 = bn(ks[0], C)
    s2, t2 = bn(ks[1], Ci)
    s3, t3 = bn(ks[2], Ci)

    w1 = 0.1 * jax.random.normal(ks[3], (Ci, C), dtype=jnp.float32)      # (out, in)
    b1 = 0.1 * jax.random.normal(ks[4], (Ci,), dtype=jnp.float32)
    w2_hwio = 0.1 * jax.random.normal(ks[5], (K, K, Ci, Ci), dtype=jnp.float32)
    b2 = 0.1 * jax.random.normal(ks[6], (Ci,), dtype=jnp.float32)
    kw3, kb3 = jax.random.split(ks[7])
    w3 = 0.1 * jax.random.normal(kw3, (C, Ci), dtype=jnp.float32)        # (out, in)
    b3 = 0.1 * jax.random.normal(kb3, (C,), dtype=jnp.float32)

    return dict(s1=s1, t1=t1, s2=s2, t2=t2, s3=s3, t3=t3,
                w1=w1, b1=b1, w2_hwio=w2_hwio, b2=b2, w3=w3, b3=b3)


def residual_block_ref(x_nchw, params, K, mask):
    """Pure-JAX reference (NHWC) for correctness checking."""
    x = jnp.transpose(x_nchw, (0, 2, 3, 1))

    def bn(h, s, t):
        return h * s.reshape(-1) + t.reshape(-1)

    h = jnp.maximum(bn(x, params["s1"], params["t1"]), 0.0)
    h = jnp.einsum("bhwi,oi->bhwo", h, params["w1"]) + params["b1"].reshape(-1)
    h = jnp.maximum(bn(h, params["s2"], params["t2"]), 0.0)
    w2 = params["w2_hwio"] * jnp.asarray(mask, jnp.float32)[:, :, None, None]
    h = lax.conv_general_dilated(h, w2, (1, 1), "SAME",
                                 dimension_numbers=("NHWC", "HWIO", "NHWC")) \
        + params["b2"].reshape(-1)
    h = jnp.maximum(bn(h, params["s3"], params["t3"]), 0.0)
    h = jnp.einsum("bhwi,oi->bhwo", h, params["w3"]) + params["b3"].reshape(-1)
    out = h + x
    return jnp.transpose(out, (0, 3, 1, 2))


if __name__ == "__main__":
    B, C, H, W = 2, 8, 16, 16
    K = 3           # kernel_size
    reduction = 2   # inner_channels = 4

    key = jax.random.PRNGKey(0)
    kx, kp = jax.random.split(key)
    x = jax.random.normal(kx, (B, C, H, W), dtype=jnp.float32)

    mask = _pixelcnn_mask_b(K)
    params = init_params(kp, C, K, reduction=reduction)

    out = residual_block_pallas(x, params, K, mask)
    out = jax.block_until_ready(out)

    ref = residual_block_ref(x, params, K, mask)
    assert out.shape == x.shape and out.dtype == jnp.float32
    if not jnp.allclose(out, ref, atol=1e-3, rtol=1e-3):
        raise AssertionError("Pallas kernel does not match JAX reference")
    print("KERNEL_OK")
</pallas_src>

<mosaic_0001>
module attributes {stable_mosaic.version = 11 : i64} {
  func.func @kernel(%arg0: i32, %arg1: memref<1x8x256xf32, #tpu.memory_space<vmem>>, %arg2: memref<5x256xf32, #tpu.memory_space<vmem>>, %arg3: memref<8x1xf32, #tpu.memory_space<vmem>>, %arg4: memref<8x1xf32, #tpu.memory_space<vmem>>, %arg5: memref<8x8xf32, #tpu.memory_space<vmem>>, %arg6: memref<8x1xf32, #tpu.memory_space<vmem>>, %arg7: memref<8x40xf32, #tpu.memory_space<vmem>>, %arg8: memref<8x1xf32, #tpu.memory_space<vmem>>, %arg9: memref<8x8xf32, #tpu.memory_space<vmem>>, %arg10: memref<8x1xf32, #tpu.memory_space<vmem>>, %arg11: memref<1x8x256xf32, #tpu.memory_space<vmem>>) attributes {dimension_semantics = [#tpu.dimension_semantics<parallel>], iteration_bounds = array<i64: 2>, scalar_prefetch = 0 : i64, scratch_operands = 0 : i64, tpu.core_type = #tpu.core_type<tc>, window_params = [{transform_indices = @transform_0, window_bounds = array<i64: 1, 8, 256>}, {pipeline_mode = #tpu.pipeline_mode<synchronous>, transform_indices = @transform_1, window_bounds = array<i64: 5, 256>}, {pipeline_mode = #tpu.pipeline_mode<synchronous>, transform_indices = @transform_2, window_bounds = array<i64: 8, 1>}, {pipeline_mode = #tpu.pipeline_mode<synchronous>, transform_indices = @transform_3, window_bounds = array<i64: 8, 1>}, {pipeline_mode = #tpu.pipeline_mode<synchronous>, transform_indices = @transform_4, window_bounds = array<i64: 8, 8>}, {pipeline_mode = #tpu.pipeline_mode<synchronous>, transform_indices = @transform_5, window_bounds = array<i64: 8, 1>}, {pipeline_mode = #tpu.pipeline_mode<synchronous>, transform_indices = @transform_6, window_bounds = array<i64: 8, 40>}, {pipeline_mode = #tpu.pipeline_mode<synchronous>, transform_indices = @transform_7, window_bounds = array<i64: 8, 1>}, {pipeline_mode = #tpu.pipeline_mode<synchronous>, transform_indices = @transform_8, window_bounds = array<i64: 8, 8>}, {pipeline_mode = #tpu.pipeline_mode<synchronous>, transform_indices = @transform_9, window_bounds = array<i64: 8, 1>}, {transform_indices = @transform_10, window_bounds = array<i64: 1, 8, 256>}]} {
    %c0 = arith.constant 0 : index
    %c0_0 = arith.constant 0 : index
    %c0_1 = arith.constant 0 : index
    %0 = vector.load %arg1[%c0, %c0_0, %c0_1] : memref<1x8x256xf32, #tpu.memory_space<vmem>>, vector<1x8x256xf32>
    %1 = vector.shape_cast %0 : vector<1x8x256xf32> to vector<8x256xf32>
    %c0_2 = arith.constant 0 : index
    %c0_3 = arith.constant 0 : index
    %2 = vector.load %arg3[%c0_2, %c0_3] : memref<8x1xf32, #tpu.memory_space<vmem>>, vector<8x1xf32>
    %3 = vector.broadcast %2 : vector<8x1xf32> to vector<8x256xf32>
    %4 = arith.mulf %1, %3 : vector<8x256xf32>
    %c0_4 = arith.constant 0 : index
    %c0_5 = arith.constant 0 : index
    %5 = vector.load %arg4[%c0_4, %c0_5] : memref<8x1xf32, #tpu.memory_space<vmem>>, vector<8x1xf32>
    %6 = vector.broadcast %5 : vector<8x1xf32> to vector<8x256xf32>
    %7 = arith.addf %4, %6 : vector<8x256xf32>
    %cst = arith.constant 0.000000e+00 : f32
    %8 = vector.broadcast %cst : f32 to vector<8x256xf32>
    %9 = arith.maximumf %7, %8 : vector<8x256xf32>
    %c0_6 = arith.constant 0 : index
    %c0_7 = arith.constant 0 : index
    %10 = vector.load %arg5[%c0_6, %c0_7] : memref<8x8xf32, #tpu.memory_space<vmem>>, vector<8x8xf32>
    %cst_8 = arith.constant dense<0.000000e+00> : vector<8x256xf32>
    %11 = tpu.matmul %10, %9, %cst_8 {dimension_numbers = #tpu.dot_dimension_numbers<[1], [0], [0], [1], [0, 0, 1, 1], [], []>} : vector<8x8xf32>, vector<8x256xf32>, vector<8x256xf32> -> vector<8x256xf32>
    %c0_9 = arith.constant 0 : index
    %c0_10 = arith.constant 0 : index
    %12 = vector.load %arg6[%c0_9, %c0_10] : memref<8x1xf32, #tpu.memory_space<vmem>>, vector<8x1xf32>
    %13 = vector.broadcast %12 : vector<8x1xf32> to vector<8x256xf32>
    %14 = arith.addf %11, %13 : vector<8x256xf32>
    %cst_11 = arith.constant 0.000000e+00 : f32
    %15 = vector.broadcast %cst_11 : f32 to vector<8x256xf32>
    %16 = arith.maximumf %14, %15 : vector<8x256xf32>
    %c17_i32 = arith.constant 17 : i32
    %17 = tpu.dynamic_rotate %16 by %c17_i32 dim 1 : vector<8x256xf32>, i32 -> vector<8x256xf32>
    %c0_12 = arith.constant 0 : index
    %c0_13 = arith.constant 0 : index
    %18 = vector.load %arg2[%c0_12, %c0_13] : memref<5x256xf32, #tpu.memory_space<vmem>>, vector<1x256xf32>
    %19 = vector.broadcast %18 : vector<1x256xf32> to vector<8x256xf32>
    %20 = arith.mulf %17, %19 : vector<8x256xf32>
    %c16_i32 = arith.constant 16 : i32
    %21 = tpu.dynamic_rotate %16 by %c16_i32 dim 1 : vector<8x256xf32>, i32 -> vector<8x256xf32>
    %c1 = arith.constant 1 : index
    %c0_14 = arith.constant 0 : index
    %22 = vector.load %arg2[%c1, %c0_14] : memref<5x256xf32, #tpu.memory_space<vmem>>, vector<1x256xf32>
    %23 = vector.broadcast %22 : vector<1x256xf32> to vector<8x256xf32>
    %24 = arith.mulf %21, %23 : vector<8x256xf32>
    %c15_i32 = arith.constant 15 : i32
    %25 = tpu.dynamic_rotate %16 by %c15_i32 dim 1 : vector<8x256xf32>, i32 -> vector<8x256xf32>
    %c2 = arith.constant 2 : index
    %c0_15 = arith.constant 0 : index
    %26 = vector.load %arg2[%c2, %c0_15] : memref<5x256xf32, #tpu.memory_space<vmem>>, vector<1x256xf32>
    %27 = vector.broadcast %26 : vector<1x256xf32> to vector<8x256xf32>
    %28 = arith.mulf %25, %27 : vector<8x256xf32>
    %c1_i32 = arith.constant 1 : i32
    %29 = tpu.dynamic_rotate %16 by %c1_i32 dim 1 : vector<8x256xf32>, i32 -> vector<8x256xf32>
    %c3 = arith.constant 3 : index
    %c0_16 = arith.constant 0 : index
    %30 = vector.load %arg2[%c3, %c0_16] : memref<5x256xf32, #tpu.memory_space<vmem>>, vector<1x256xf32>
    %31 = vector.broadcast %30 : vector<1x256xf32> to vector<8x256xf32>
    %32 = arith.mulf %29, %31 : vector<8x256xf32>
    %33 = tpu.concatenate %20, %24, %28, %32, %16 in 0 : vector<8x256xf32>, vector<8x256xf32>, vector<8x256xf32>, vector<8x256xf32>, vector<8x256xf32> -> vector<40x256xf32>
    %c0_17 = arith.constant 0 : index
    %c0_18 = arith.constant 0 : index
    %34 = vector.load %arg7[%c0_17, %c0_18] : memref<8x40xf32, #tpu.memory_space<vmem>>, vector<8x40xf32>
    %cst_19 = arith.constant dense<0.000000e+00> : vector<8x256xf32>
    %35 = tpu.matmul %34, %33, %cst_19 {dimension_numbers = #tpu.dot_dimension_numbers<[1], [0], [0], [1], [0, 0, 1, 1], [], []>} : vector<8x40xf32>, vector<40x256xf32>, vector<8x256xf32> -> vector<8x256xf32>
    %c0_20 = arith.constant 0 : index
    %c0_21 = arith.constant 0 : index
    %36 = vector.load %arg8[%c0_20, %c0_21] : memref<8x1xf32, #tpu.memory_space<vmem>>, vector<8x1xf32>
    %37 = vector.broadcast %36 : vector<8x1xf32> to vector<8x256xf32>
    %38 = arith.addf %35, %37 : vector<8x256xf32>
    %cst_22 = arith.constant 0.000000e+00 : f32
    %39 = vector.broadcast %cst_22 : f32 to vector<8x256xf32>
    %40 = arith.maximumf %38, %39 : vector<8x256xf32>
    %c0_23 = arith.constant 0 : index
    %c0_24 = arith.constant 0 : index
    %41 = vector.load %arg9[%c0_23, %c0_24] : memref<8x8xf32, #tpu.memory_space<vmem>>, vector<8x8xf32>
    %cst_25 = arith.constant dense<0.000000e+00> : vector<8x256xf32>
    %42 = tpu.matmul %41, %40, %cst_25 {dimension_numbers = #tpu.dot_dimension_numbers<[1], [0], [0], [1], [0, 0, 1, 1], [], []>} : vector<8x8xf32>, vector<8x256xf32>, vector<8x256xf32> -> vector<8x256xf32>
    %c0_26 = arith.constant 0 : index
    %c0_27 = arith.constant 0 : index
    %43 = vector.load %arg10[%c0_26, %c0_27] : memref<8x1xf32, #tpu.memory_space<vmem>>, vector<8x1xf32>
    %44 = vector.broadcast %43 : vector<8x1xf32> to vector<8x256xf32>
    %45 = arith.addf %42, %44 : vector<8x256xf32>
    %46 = arith.addf %45, %1 : vector<8x256xf32>
    %c0_28 = arith.constant 0 : index
    %c0_29 = arith.constant 0 : index
    %c0_30 = arith.constant 0 : index
    %47 = vector.load %arg11[%c0_28, %c0_29, %c0_30] : memref<1x8x256xf32, #tpu.memory_space<vmem>>, vector<1x8x256xf32>
    %48 = vector.shape_cast %47 : vector<1x8x256xf32> to vector<8x256xf32>
    %49 = vector.shape_cast %46 : vector<8x256xf32> to vector<1x8x256xf32>
    tpu.vector_store %arg11[%c0_28, %c0_29, %c0_30], %49 {strides = array<i32>} : memref<1x8x256xf32, #tpu.memory_space<vmem>>, vector<1x8x256xf32>,
    return
  }
  func.func @transform_0(%arg0: i32) -> (i32, i32, i32) {
    %c0_i32 = arith.constant 0 : i32
    %c0_i32_0 = arith.constant 0 : i32
    %c0_i32_1 = arith.constant 0 : i32
    return %arg0, %c0_i32, %c0_i32_0 : i32, i32, i32
  }
  func.func @transform_1(%arg0: i32) -> (i32, i32) {
    %c0_i32 = arith.constant 0 : i32
    %c0_i32_0 = arith.constant 0 : i32
    %c0_i32_1 = arith.constant 0 : i32
    return %c0_i32, %c0_i32_0 : i32, i32
  }
  func.func @transform_2(%arg0: i32) -> (i32, i32) {
    %c0_i32 = arith.constant 0 : i32
    %c0_i32_0 = arith.constant 0 : i32
    %c0_i32_1 = arith.constant 0 : i32
    return %c0_i32, %c0_i32_0 : i32, i32
  }
  func.func @transform_3(%arg0: i32) -> (i32, i32) {
    %c0_i32 = arith.constant 0 : i32
    %c0_i32_0 = arith.constant 0 : i32
    %c0_i32_1 = arith.constant 0 : i32
    return %c0_i32, %c0_i32_0 : i32, i32
  }
  func.func @transform_4(%arg0: i32) -> (i32, i32) {
    %c0_i32 = arith.constant 0 : i32
    %c0_i32_0 = arith.constant 0 : i32
    %c0_i32_1 = arith.constant 0 : i32
    return %c0_i32, %c0_i32_0 : i32, i32
  }
  func.func @transform_5(%arg0: i32) -> (i32, i32) {
    %c0_i32 = arith.constant 0 : i32
    %c0_i32_0 = arith.constant 0 : i32
    %c0_i32_1 = arith.constant 0 : i32
    return %c0_i32, %c0_i32_0 : i32, i32
  }
  func.func @transform_6(%arg0: i32) -> (i32, i32) {
    %c0_i32 = arith.constant 0 : i32
    %c0_i32_0 = arith.constant 0 : i32
    %c0_i32_1 = arith.constant 0 : i32
    return %c0_i32, %c0_i32_0 : i32, i32
  }
  func.func @transform_7(%arg0: i32) -> (i32, i32) {
    %c0_i32 = arith.constant 0 : i32
    %c0_i32_0 = arith.constant 0 : i32
    %c0_i32_1 = arith.constant 0 : i32
    return %c0_i32, %c0_i32_0 : i32, i32
  }
  func.func @transform_8(%arg0: i32) -> (i32, i32) {
    %c0_i32 = arith.constant 0 : i32
    %c0_i32_0 = arith.constant 0 : i32
    %c0_i32_1 = arith.constant 0 : i32
    return %c0_i32, %c0_i32_0 : i32, i32
  }
  func.func @transform_9(%arg0: i32) -> (i32, i32) {
    %c0_i32 = arith.constant 0 : i32
    %c0_i32_0 = arith.constant 0 : i32
    %c0_i32_1 = arith.constant 0 : i32
    return %c0_i32, %c0_i32_0 : i32, i32
  }
  func.func @transform_10(%arg0: i32) -> (i32, i32, i32) {
    %c0_i32 = arith.constant 0 : i32
    %c0_i32_0 = arith.constant 0 : i32
    %c0_i32_1 = arith.constant 0 : i32
    return %arg0, %c0_i32, %c0_i32_0 : i32, i32, i32
  }
}

</mosaic_0001>

<llo_original>
// kernel: tpu_custom_call.1
$region0: #{tpu_custom_call.1}
  #allocation0 [shape = 'u32[]', space=smem, size = 0x4, offset = 0x4, fixed_abs, tag = 'smem constant byte address 0x4 - core index']
  #allocation1 [shape = 'u32[72,128]{1,0:T(1,128)}', space=vmem, size = 0x9000, scoped, tag = 'internal scratch']
  %s0 = inlined_call_operand.hbm [shape: f32[2,8,256], index: 0, kind: input, shape index: {}]
  %s1 = inlined_call_operand.vmem [shape: f32[5,256], index: 1, kind: input, shape index: {}]
  %s2 = inlined_call_operand.vmem [shape: f32[8,1], index: 2, kind: input, shape index: {}]
  %s3 = inlined_call_operand.vmem [shape: f32[8,1], index: 3, kind: input, shape index: {}]
  %s4 = inlined_call_operand.vmem [shape: f32[8,8], index: 4, kind: input, shape index: {}]
  %s5 = inlined_call_operand.vmem [shape: f32[8,1], index: 5, kind: input, shape index: {}]
  %s6 = inlined_call_operand.vmem [shape: f32[8,40], index: 6, kind: input, shape index: {}]
  %s7 = inlined_call_operand.vmem [shape: f32[8,1], index: 7, kind: input, shape index: {}]
  %s8 = inlined_call_operand.vmem [shape: f32[8,8], index: 8, kind: input, shape index: {}]
  %s9 = inlined_call_operand.vmem [shape: f32[8,1], index: 9, kind: input, shape index: {}]
  %s10 = inlined_call_operand.hbm [shape: f32[2,8,256], index: 10, kind: output, shape index: {}]
  %s11 = sld [smem:[#allocation0]]
  $region77: #{tpu_custom_call.1} parent=0
    _
  %s13 = ssub.s32 1, %s11
  %s14 = scalar_select 0, %s13, %s11
  $region1: #{tpu_custom_call.1} parent=0
    #allocation2 [shape = 'u8[16384]{0}', space=vmem, size = 0x4000, scoped, tag = 'input window, operand 0']
    #allocation3 [shape = 's32[2]{0}', space=sflag, size = 0x8, scoped, tag = 'scoped memory for tpu_custom_call.1']
    #allocation4 [shape = 's32[2]{0}', space=sflag, size = 0x8, scoped, tag = 'scoped memory for tpu_custom_call.1']
    #allocation5 [shape = 'u8[16384]{0}', space=vmem, size = 0x4000, scoped, tag = 'output window, operand 0']
    %15 = vsyncpa [#allocation3], 0
    %s16 = scalar_lea.sflag [#allocation3], 1
    %17 = vsyncpa %s16, 0
    %18 = vsyncpa [#allocation4], 0
    %s19 = scalar_lea.sflag [#allocation4], 1
    %20 = vsyncpa %s19, 0
    loop: start=0, step=1, limit=4
    $region2: #{tpu_custom_call.1} parent=1 // loop_pre_header
      _
    $region3: #{tpu_custom_call.1} parent=1 // loop_header
      %s22 = sphi 0, %s26
      %p23 = scmp.ge.s32.totalorder %s22, 4
      %s32 = sphi 0, %s34
      %s35 = sphi 0, %s32
      %s36 = sphi 0, %s35
      %s52 = sphi 0, %s36
      %s56 = sphi 0, %s56
      %s58 = sphi 0, %s56
      %s59 = sphi 0, %s58
      %s73 = sphi 0, %s59
      %s77 = sphi 0, %s77
      %s79 = sphi 0, %s77
      %s80 = sphi 0, %s79
      %s94 = sphi 0, %s80
      %s98 = sphi 0, %s98
      %s100 = sphi 0, %s98
      %s101 = sphi 0, %s100
      %s115 = sphi 0, %s101
      %s119 = sphi 0, %s119
      %s121 = sphi 0, %s119
      %s122 = sphi 0, %s121
      %s136 = sphi 0, %s122
      %s140 = sphi 0, %s140
      %s142 = sphi 0, %s140
      %s143 = sphi 0, %s142
      %s157 = sphi 0, %s143
      %s161 = sphi 0, %s161
      %s163 = sphi 0, %s161
      %s164 = sphi 0, %s163
      %s178 = sphi 0, %s164
      %s182 = sphi 0, %s182
      %s184 = sphi 0, %s182
      %s185 = sphi 0, %s184
      %s199 = sphi 0, %s185
      %s203 = sphi 0, %s203
      %s205 = sphi 0, %s203
      %s206 = sphi 0, %s205
      %s220 = sphi 0, %s206
      %s224 = sphi 0, %s224
      %s226 = sphi 0, %s224
      %s227 = sphi 0, %s226
      %s241 = sphi 0, %s227
      %s247 = sphi 0, %s249
      %s250 = sphi 0, %s247
      %s251 = sphi 0, %s250
      %s267 = sphi 0, %s251
    $region4: #{tpu_custom_call.1} parent=1 // loop_header_branch
      %25 = sbr.rel (%p23) target = $region8
    $region5: #{tpu_custom_call.1} parent=1 // loop_body
      %s27 = ssub.s32 %s22, 1
      %s28 = ssub.s32 %s22, 2
      %s29 = sadd.s32 %s22, 1
      %s30 = ssub.s32 %s22, %s29
      %p31 = scmp.eq.s32.totalorder %s30, 0
      %s33 = sadd.s32 %s32, 1
      %s34 = scalar_select %p31, %s32, %s33
      %p37 = pneg %p31
      %p38 = scmp.eq.s32.totalorder %s22, 1
      %p39 = por %p37, %p38
      %p40 = scmp.ne.s32.totalorder %s32, %s35
      %p41 = scmp.eq.s32.totalorder %s22, 0
      %p42 = por %p40, %p41
      %p43 = scmp.ne.s32.totalorder %s32, %s35
      %p44 = scmp.eq.s32.totalorder %s27, 1
      %p45 = por %p43, %p44
      %p46 = scmp.ne.s32.totalorder %s35, %s36
      %p47 = scmp.eq.s32.totalorder %s27, 0
      %p48 = por %p46, %p47
      %p49 = scmp.ne.s32.totalorder %s35, %s36
      %p50 = scmp.eq.s32.totalorder %s28, 1
      %p51 = por %p49, %p50
      %p53 = scmp.ne.s32.totalorder %s36, %s52
      %p54 = scmp.eq.s32.totalorder %s28, 0
      %p55 = por %p53, %p54
      %s57 = sadd.s32 %s56, 1
      %p60 = scmp.eq.s32.totalorder %s22, 1
      %p61 = scmp.ne.s32.totalorder %s56, %s58
      %p62 = scmp.eq.s32.totalorder %s22, 0
      %p63 = por %p61, %p62
      %p64 = scmp.ne.s32.totalorder %s56, %s58
      %p65 = scmp.eq.s32.totalorder %s27, 1
      %p66 = por %p64, %p65
      %p67 = scmp.ne.s32.totalorder %s58, %s59
      %p68 = scmp.eq.s32.totalorder %s27, 0
      %p69 = por %p67, %p68
      %p70 = scmp.ne.s32.totalorder %s58, %s59
      %p71 = scmp.eq.s32.totalorder %s28, 1
      %p72 = por %p70, %p71
      %p74 = scmp.ne.s32.totalorder %s59, %s73
      %p75 = scmp.eq.s32.totalorder %s28, 0
      %p76 = por %p74, %p75
      %s78 = sadd.s32 %s77, 1
      %p81 = scmp.eq.s32.totalorder %s22, 1
      %p82 = scmp.ne.s32.totalorder %s77, %s79
      %p83 = scmp.eq.s32.totalorder %s22, 0
      %p84 = por %p82, %p83
      %p85 = scmp.ne.s32.totalorder %s77, %s79
      %p86 = scmp.eq.s32.totalorder %s27, 1
      %p87 = por %p85, %p86
      %p88 = scmp.ne.s32.totalorder %s79, %s80
      %p89 = scmp.eq.s32.totalorder %s27, 0
      %p90 = por %p88, %p89
      %p91 = scmp.ne.s32.totalorder %s79, %s80
      %p92 = scmp.eq.s32.totalorder %s28, 1
      %p93 = por %p91, %p92
      %p95 = scmp.ne.s32.totalorder %s80, %s94
      %p96 = scmp.eq.s32.totalorder %s28, 0
      %p97 = por %p95, %p96
      %s99 = sadd.s32 %s98, 1
      %p102 = scmp.eq.s32.totalorder %s22, 1
      %p103 = scmp.ne.s32.totalorder %s98, %s100
      %p104 = scmp.eq.s32.totalorder %s22, 0
      %p105 = por %p103, %p104
      %p106 = scmp.ne.s32.totalorder %s98, %s100
      %p107 = scmp.eq.s32.totalorder %s27, 1
      %p108 = por %p106, %p107
      %p109 = scmp.ne.s32.totalorder %s100, %s101
      %p110 = scmp.eq.s32.totalorder %s27, 0
      %p111 = por %p109, %p110
      %p112 = scmp.ne.s32.totalorder %s100, %s101
      %p113 = scmp.eq.s32.totalorder %s28, 1
      %p114 = por %p112, %p113
      %p116 = scmp.ne.s32.totalorder %s101, %s115
      %p117 = scmp.eq.s32.totalorder %s28, 0
      %p118 = por %p116, %p117
      %s120 = sadd.s32 %s119, 1
      %p123 = scmp.eq.s32.totalorder %s22, 1
      %p124 = scmp.ne.s32.totalorder %s119, %s121
      %p125 = scmp.eq.s32.totalorder %s22, 0
      %p126 = por %p124, %p125
      %p127 = scmp.ne.s32.totalorder %s119, %s121
      %p128 = scmp.eq.s32.totalorder %s27, 1
      %p129 = por %p127, %p128
      %p130 = scmp.ne.s32.totalorder %s121, %s122
      %p131 = scmp.eq.s32.totalorder %s27, 0
      %p132 = por %p130, %p131
      %p133 = scmp.ne.s32.totalorder %s121, %s122
      %p134 = scmp.eq.s32.totalorder %s28, 1
      %p135 = por %p133, %p134
      %p137 = scmp.ne.s32.totalorder %s122, %s136
      %p138 = scmp.eq.s32.totalorder %s28, 0
      %p139 = por %p137, %p138
      %s141 = sadd.s32 %s140, 1
      %p144 = scmp.eq.s32.totalorder %s22, 1
      %p145 = scmp.ne.s32.totalorder %s140, %s142
      %p146 = scmp.eq.s32.totalorder %s22, 0
      %p147 = por %p145, %p146
      %p148 = scmp.ne.s32.totalorder %s140, %s142
      %p149 = scmp.eq.s32.totalorder %s27, 1
      %p150 = por %p148, %p149
      %p151 = scmp.ne.s32.totalorder %s142, %s143
      %p152 = scmp.eq.s32.totalorder %s27, 0
      %p153 = por %p151, %p152
      %p154 = scmp.ne.s32.totalorder %s142, %s143
      %p155 = scmp.eq.s32.totalorder %s28, 1
      %p156 = por %p154, %p155
      %p158 = scmp.ne.s32.totalorder %s143, %s157
      %p159 = scmp.eq.s32.totalorder %s28, 0
      %p160 = por %p158, %p159
      %s162 = sadd.s32 %s161, 1
      %p165 = scmp.eq.s32.totalorder %s22, 1
      %p166 = scmp.ne.s32.totalorder %s161, %s163
      %p167 = scmp.eq.s32.totalorder %s22, 0
      %p168 = por %p166, %p167
      %p169 = scmp.ne.s32.totalorder %s161, %s163
      %p170 = scmp.eq.s32.totalorder %s27, 1
      %p171 = por %p169, %p170
      %p172 = scmp.ne.s32.totalorder %s163, %s164
      %p173 = scmp.eq.s32.totalorder %s27, 0
      %p174 = por %p172, %p173
      %p175 = scmp.ne.s32.totalorder %s163, %s164
      %p176 = scmp.eq.s32.totalorder %s28, 1
      %p177 = por %p175, %p176
      %p179 = scmp.ne.s32.totalorder %s164, %s178
      %p180 = scmp.eq.s32.totalorder %s28, 0
      %p181 = por %p179, %p180
      %s183 = sadd.s32 %s182, 1
      %p186 = scmp.eq.s32.totalorder %s22, 1
      %p187 = scmp.ne.s32.totalorder %s182, %s184
      %p188 = scmp.eq.s32.totalorder %s22, 0
      %p189 = por %p187, %p188
      %p190 = scmp.ne.s32.totalorder %s182, %s184
      %p191 = scmp.eq.s32.totalorder %s27, 1
      %p192 = por %p190, %p191
      %p193 = scmp.ne.s32.totalorder %s184, %s185
      %p194 = scmp.eq.s32.totalorder %s27, 0
      %p195 = por %p193, %p194
      %p196 = scmp.ne.s32.totalorder %s184, %s185
      %p197 = scmp.eq.s32.totalorder %s28, 1
      %p198 = por %p196, %p197
      %p200 = scmp.ne.s32.totalorder %s185, %s199
      %p201 = scmp.eq.s32.totalorder %s28, 0
      %p202 = por %p200, %p201
      %s204 = sadd.s32 %s203, 1
      %p207 = scmp.eq.s32.totalorder %s22, 1
      %p208 = scmp.ne.s32.totalorder %s203, %s205
      %p209 = scmp.eq.s32.totalorder %s22, 0
      %p210 = por %p208, %p209
      %p211 = scmp.ne.s32.totalorder %s203, %s205
      %p212 = scmp.eq.s32.totalorder %s27, 1
      %p213 = por %p211, %p212
      %p214 = scmp.ne.s32.totalorder %s205, %s206
      %p215 = scmp.eq.s32.totalorder %s27, 0
      %p216 = por %p214, %p215
      %p217 = scmp.ne.s32.totalorder %s205, %s206
      %p218 = scmp.eq.s32.totalorder %s28, 1
      %p219 = por %p217, %p218
      %p221 = scmp.ne.s32.totalorder %s206, %s220
      %p222 = scmp.eq.s32.totalorder %s28, 0
      %p223 = por %p221, %p222
      %s225 = sadd.s32 %s224, 1
      %p228 = scmp.eq.s32.totalorder %s22, 1
      %p229 = scmp.ne.s32.totalorder %s224, %s226
      %p230 = scmp.eq.s32.totalorder %s22, 0
      %p231 = por %p229, %p230
      %p232 = scmp.ne.s32.totalorder %s224, %s226
      %p233 = scmp.eq.s32.totalorder %s27, 1
      %p234 = por %p232, %p233
      %p235 = scmp.ne.s32.totalorder %s226, %s227
      %p236 = scmp.eq.s32.totalorder %s27, 0
      %p237 = por %p235, %p236
      %p238 = scmp.ne.s32.totalorder %s226, %s227
      %p239 = scmp.eq.s32.totalorder %s28, 1
      %p240 = por %p238, %p239
      %p242 = scmp.ne.s32.totalorder %s227, %s241
      %p243 = scmp.eq.s32.totalorder %s28, 0
      %p244 = por %p242, %p243
      %s245 = ssub.s32 %s22, %s29
      %p246 = scmp.eq.s32.totalorder %s245, 0
      %s248 = sadd.s32 %s247, 1
      %s249 = scalar_select %p246, %s247, %s248
      %p252 = pneg %p246
      %p253 = scmp.eq.s32.totalorder %s22, 1
      %p254 = por %p252, %p253
      %p255 = scmp.ne.s32.totalorder %s247, %s250
      %p256 = scmp.eq.s32.totalorder %s22, 0
      %p257 = por %p255, %p256
      %p258 = scmp.ne.s32.totalorder %s247, %s250
      %p259 = scmp.eq.s32.totalorder %s27, 1
      %p260 = por %p258, %p259
      %p261 = scmp.ne.s32.totalorder %s250, %s251
      %p262 = scmp.eq.s32.totalorder %s27, 0
      %p263 = por %p261, %p262
      %p264 = scmp.ne.s32.totalorder %s250, %s251
      %p265 = scmp.eq.s32.totalorder %s28, 1
      %p266 = por %p264, %p265
      %p268 = scmp.ne.s32.totalorder %s251, %s267
      %p269 = scmp.eq.s32.totalorder %s28, 0
      %p270 = por %p268, %p269
      %p271 = scmp.le.s32.totalorder 1, %s22
      %p272 = scmp.lt.s32.totalorder %s22, 3
      %p273 = pnand %p271, %p272
      %p274 = pneg %p273
      // Predicated region
      $region9: #{tpu_custom_call.1} parent=5 // pred_check
        _
      $region10: #{tpu_custom_call.1} parent=5 // pred_check_branch
        %276 = sbr.rel (%p273) target = $region12
      $region11: #{tpu_custom_call.1} parent=5 // pred_region
        %s277 = ssub.s32 %s22, 1
        // Predicated region
        $region13: #{tpu_custom_call.1} parent=11 // pred_check
          %p278 = pneg %p69
        $region14: #{tpu_custom_call.1} parent=11 // pred_check_branch
          %280 = sbr.rel (%p278) target = $region16
        $region15: #{tpu_custom_call.1} parent=11 // pred_region
          _
        $region16: #{tpu_custom_call.1} parent=11 // pred_fallthru
          _
        // Predicated region
        $region17: #{tpu_custom_call.1} parent=11 // pred_check
          %p281 = pneg %p90
        $region18: #{tpu_custom_call.1} parent=11 // pred_check_branch
          %283 = sbr.rel (%p281) target = $region20
        $region19: #{tpu_custom_call.1} parent=11 // pred_region
          _
        $region20: #{tpu_custom_call.1} parent=11 // pred_fallthru
          _
        // Predicated region
        $region21: #{tpu_custom_call.1} parent=11 // pred_check
          %p284 = pneg %p111
        $region22: #{tpu_custom_call.1} parent=11 // pred_check_branch
          %286 = sbr.rel (%p284) target = $region24
        $region23: #{tpu_custom_call.1} parent=11 // pred_region
          _
        $region24: #{tpu_custom_call.1} parent=11 // pred_fallthru
          _
        // Predicated region
        $region25: #{tpu_custom_call.1} parent=11 // pred_check
          %p287 = pneg %p132
        $region26: #{tpu_custom_call.1} parent=11 // pred_check_branch
          %289 = sbr.rel (%p287) target = $region28
        $region27: #{tpu_custom_call.1} parent=11 // pred_region
          _
        $region28: #{tpu_custom_call.1} parent=11 // pred_fallthru
          _
        // Predicated region
        $region29: #{tpu_custom_call.1} parent=11 // pred_check
          %p290 = pneg %p153
        $region30: #{tpu_custom_call.1} parent=11 // pred_check_branch
          %292 = sbr.rel (%p290) target = $region32
        $region31: #{tpu_custom_call.1} parent=11 // pred_region
          _
        $region32: #{tpu_custom_call.1} parent=11 // pred_fallthru
          _
        // Predicated region
        $region33: #{tpu_custom_call.1} parent=11 // pred_check
          %p293 = pneg %p174
        $region34: #{tpu_custom_call.1} parent=11 // pred_check_branch
          %295 = sbr.rel (%p293) target = $region36
        $region35: #{tpu_custom_call.1} parent=11 // pred_region
          _
        $region36: #{tpu_custom_call.1} parent=11 // pred_fallthru
          _
        // Predicated region
        $region37: #{tpu_custom_call.1} parent=11 // pred_check
          %p296 = pneg %p195
        $region38: #{tpu_custom_call.1} parent=11 // pred_check_branch
          %298 = sbr.rel (%p296) target = $region40
        $region39: #{tpu_custom_call.1} parent=11 // pred_region
          _
        $region40: #{tpu_custom_call.1} parent=11 // pred_fallthru
          _
        // Predicated region
        $region41: #{tpu_custom_call.1} parent=11 // pred_check
          %p299 = pneg %p216
        $region42: #{tpu_custom_call.1} parent=11 // pred_check_branch
          %301 = sbr.rel (%p299) target = $region44
        $region43: #{tpu_custom_call.1} parent=11 // pred_region
          _
        $region44: #{tpu_custom_call.1} parent=11 // pred_fallthru
          _
        // Predicated region
        $region45: #{tpu_custom_call.1} parent=11 // pred_check
          %p302 = pneg %p237
        $region46: #{tpu_custom_call.1} parent=11 // pred_check_branch
          %304 = sbr.rel (%p302) target = $region48
        $region47: #{tpu_custom_call.1} parent=11 // pred_region
          _
        $region48: #{tpu_custom_call.1} parent=11 // pred_fallthru
          _
      $region12: #{tpu_custom_call.1} parent=5 // pred_fallthru
        _
      %p305 = scmp.lt.s32.totalorder %s22, 2
      // Predicated region
      $region49: #{tpu_custom_call.1} parent=5 // pred_check
        %p306 = pneg %p305
      $region50: #{tpu_custom_call.1} parent=5 // pred_check_branch
        %308 = sbr.rel (%p306) target = $region52
      $region51: #{tpu_custom_call.1} parent=5 // pred_region
        // Predicated region
        $region53: #{tpu_custom_call.1} parent=51 // pred_check
          %p309 = pneg %p42
        $region54: #{tpu_custom_call.1} parent=51 // pred_check_branch
          %311 = sbr.rel (%p309) target = $region56
        $region55: #{tpu_custom_call.1} parent=51 // pred_region
          %s312 = sand.u32 %s32, 1
          %s313 = scalar_lea.sflag [#allocation3], %s312
          %s314 = sand.u32 %s32, 1
          %s315 = smul.addr %s314, 16
          %s316 = scalar_lea.vmem [#allocation2], %s315
          %318 = vsyncadd %s313, 0
          %s319 = smul.addr %s22, 2
          %s320 = smul.addr %s319, 8
          %s321 = scalar_lea.hbm %s0, %s320
          %s323 = sshll.u32 %s321, 4
          %s324 = int_to_ptr.hbm [resolvable:$true] %s323
          %s325 = sshll.u32 %s316, 4
          %s326 = int_to_ptr.vmem [resolvable:$true] %s325
          %328 = dma.hbm_to_vmem [thread:$0]  %s324, 256, %s326, %s313
        $region56: #{tpu_custom_call.1} parent=51 // pred_fallthru
          _
      $region52: #{tpu_custom_call.1} parent=5 // pred_fallthru
        _
      %p329 = scmp.le.s32.totalorder 1, %s22
      %p330 = scmp.lt.s32.totalorder %s22, 3
      %p331 = pnand %p329, %p330
      %p332 = pneg %p331
      // Predicated region
      $region57: #{tpu_custom_call.1} parent=5 // pred_check
        _
      $region58: #{tpu_custom_call.1} parent=5 // pred_check_branch
        %334 = sbr.rel (%p331) target = $region60
      $region59: #{tpu_custom_call.1} parent=5 // pred_region
        %s335 = ssub.s32 %s22, 1
        %s336 = sand.u32 %s35, 1
        %s337 = scalar_lea.sflag [#allocation3], %s336
        %s338 = sand.u32 %s35, 1
        %s339 = smul.addr %s338, 16
        %s340 = scalar_lea.vmem [#allocation2], %s339
        // Predicated region
        $region61: #{tpu_custom_call.1} parent=59 // pred_check
          %p341 = pneg %p48
        $region62: #{tpu_custom_call.1} parent=59 // pred_check_branch
          %343 = sbr.rel (%p341) target = $region64
        $region63: #{tpu_custom_call.1} parent=59 // pred_region
          %345 = dma.done %s337, 256
        $region64: #{tpu_custom_call.1} parent=59 // pred_fallthru
          _
        %s346 = sand.u32 %s35, 1
        %s347 = scalar_lea.sflag [#allocation3], %s346
        %s348 = sand.u32 %s35, 1
        %s349 = smul.addr %s348, 16
        %s350 = scalar_lea.vmem [#allocation2], %s349
        %p351 = pneg %p48
        %p352 = pneg %p45
        %p353 = pneg %p69
        %p354 = pneg %p66
        %p355 = pneg %p90
        %p356 = pneg %p87
        %p357 = pneg %p111
        %p358 = pneg %p108
        %p359 = pneg %p132
        %p360 = pneg %p129
        %p361 = pneg %p153
        %p362 = pneg %p150
        %p363 = pneg %p174
        %p364 = pneg %p171
        %p365 = pneg %p195
        %p366 = pneg %p192
        %p367 = pneg %p216
        %p368 = pneg %p213
        %p369 = pneg %p237
        %p370 = pneg %p234
        %p371 = pneg %p263
        %p372 = pneg %p260
        %s373 = sand.u32 %s250, 1
        %s374 = scalar_lea.sflag [#allocation4], %s373
        %s375 = sand.u32 %s250, 1
        %s376 = smul.addr %s375, 16
        %s377 = scalar_lea.vmem [#allocation5], %s376
        %v378 = vld [vmem:[%s340] sm:$0xff]
        %v379 = vld [vmem:[%s340 + $0x8] sm:$0xff]
        %v380 = vld [vmem:[%s2] sm:$0xff]
        %382 = vset.pattern.permute.xlu0 0
        %383 = vperm.xlu0 %382, %v380
        %v384 = vpop.permute.xlu0 %383
        %v386 = vmul.f32 %v378, %v384
        %v387 = vmul.f32 %v379, %v384
        %v388 = vld [vmem:[%s3] sm:$0xff]
        %390 = vset.pattern.permute.xlu0 0
        %391 = vperm.xlu0 %390, %v388
        %v392 = vpop.permute.xlu0 %391
        %v394 = vadd.f32 %v386, %v392
        %v395 = vadd.f32 %v387, %v392
        %v396 = vmax.f32 %v394, 0.0
        %v397 = vmax.f32 %v395, 0.0
        %v398 = vld [vmem:[%s4] sm:$0xff]
        %v399 = vld [vmem:[%s5] sm:$0xff]
        %401 = vset.pattern.permute.xlu0 0
        %402 = vperm.xlu0 %401, %v399
        %v403 = vpop.permute.xlu0 %402
        %vm405 = vcmask 64512
        %v407 = vsel %vm405, %v398, 0
        %409 = vmatpush.msra.mxu0 0.0
        %410 = vmatpush.msra.mxu0 0.0
        %411 = vmatpush.msra.mxu0 0.0
        %412 = vmatpush.msra.mxu0 0.0
        %413 = vmatpush.msra.mxu0 0.0
        %414 = vmatpush.msra.mxu0 0.0
        %415 = vmatpush.msra.mxu0 0.0
        %416 = vmatpush.msra.mxu0 0.0
        %417 = vmatpush.msra.mxu0 0.0
        %418 = vmatpush.msra.mxu0 0.0
        %419 = vmatpush.msra.mxu0 0.0
        %420 = vmatpush.msra.mxu0 0.0
        %421 = vmatpush.msra.mxu0 0.0
        %422 = vmatpush.msra.mxu0 0.0
        %423 = vmatpush.msra.mxu0 0.0
        %424 = vmatpush.msra.mxu0 %v396
        %425 = vmatmul.f32.gmra.mxu0 %v407
        %v426 = vpop.f32.mrf.mxu0
        %v427 = vadd.f32 %v403, %v426
        %428 = vdwg.mxu0
        %429 = vmatpush.msra.mxu0 0.0
        %430 = vmatpush.msra.mxu0 0.0
        %431 = vmatpush.msra.mxu0 0.0
        %432 = vmatpush.msra.mxu0 0.0
        %433 = vmatpush.msra.mxu0 0.0
        %434 = vmatpush.msra.mxu0 0.0
        %435 = vmatpush.msra.mxu0 0.0
        %436 = vmatpush.msra.mxu0 0.0
        %437 = vmatpush.msra.mxu0 0.0
        %438 = vmatpush.msra.mxu0 0.0
        %439 = vmatpush.msra.mxu0 0.0
        %440 = vmatpush.msra.mxu0 0.0
        %441 = vmatpush.msra.mxu0 0.0
        %442 = vmatpush.msra.mxu0 0.0
        %443 = vmatpush.msra.mxu0 0.0
        %444 = vmatpush.msra.mxu0 %v397
        %445 = vmatmul.f32.gmra.mxu0 %v407
        %v446 = vpop.f32.mrf.mxu0
        %v447 = vadd.f32 %v403, %v446
        %448 = vdwg.mxu0
        %v449 = vmax.f32 %v427, 0.0
        %v450 = vmax.f32 %v447, 0.0
        %451 = vrot.lane.b32.xlu0 %v449, 17
        %v452 = vpop.permute.xlu0 %451
        %453 = vrot.lane.b32.xlu0 %v450, 17
        %v454 = vpop.permute.xlu0 %453
        %v455 = vlaneseq
        %v456 = vand.u32 %v455, 127
        %vm457 = vcmp.lt.s32.totalorder %v456, 17
        %v458 = vsel %vm457, %v452, %v454
        %v459 = vsel %vm457, %v454, %v452
        %v460 = vld [vmem:[%s1] ss:$8 sm:$0x3]
        %v462 = vperm.slane %v460, 0
        %v463 = vperm.slane %v460, 1
        %v466 = vmul.f32 %v459, %v462
        %v467 = vmul.f32 %v458, %v463
        %468 = vrot.lane.b32.xlu0 %v449, 16
        %v469 = vpop.permute.xlu0 %468
        %470 = vrot.lane.b32.xlu0 %v450, 16
        %v471 = vpop.permute.xlu0 %470
        %vm472 = vcmp.lt.s32.totalorder %v456, 16
        %v473 = vsel %vm472, %v469, %v471
        %v474 = vsel %vm472, %v471, %v469
        %s475 = scalar_lea.vmem %s1, 1
        %v476 = vld [vmem:[%s475] ss:$8 sm:$0x3]
        %v478 = vperm.slane %v476, 0
        %v479 = vperm.slane %v476, 1
        %v482 = vmul.f32 %v474, %v478
        %v483 = vmul.f32 %v473, %v479
        %484 = vrot.lane.b32.xlu0 %v449, 15
        %v485 = vpop.permute.xlu0 %484
        %486 = vrot.lane.b32.xlu0 %v450, 15
        %v487 = vpop.permute.xlu0 %486
        %vm488 = vcmp.lt.s32.totalorder %v456, 15
        %v489 = vsel %vm488, %v485, %v487
        %v490 = vsel %vm488, %v487, %v485
        %s491 = scalar_lea.vmem %s1, 2
        %v492 = vld [vmem:[%s491] ss:$8 sm:$0x3]
        %v494 = vperm.slane %v492, 0
        %v495 = vperm.slane %v492, 1
        %v498 = vmul.f32 %v490, %v494
        %v499 = vmul.f32 %v489, %v495
        %500 = vrot.lane.b32.xlu0 %v449, 1
        %v501 = vpop.permute.xlu0 %500
        %502 = vrot.lane.b32.xlu0 %v450, 1
        %v503 = vpop.permute.xlu0 %502
        %vm504 = vcmp.lt.s32.totalorder %v456, 1
        %v505 = vsel %vm504, %v501, %v503
        %v506 = vsel %vm504, %v503, %v501
        %s507 = scalar_lea.vmem %s1, 3
        %v508 = vld [vmem:[%s507] ss:$8 sm:$0x3]
        %v510 = vperm.slane %v508, 0
        %v511 = vperm.slane %v508, 1
        %v514 = vmul.f32 %v506, %v510
        %v515 = vmul.f32 %v505, %v511
        %v516 = vld [vmem:[%s6] sm:$0xff]
        %v517 = vld [vmem:[%s7] sm:$0xff]
        %519 = vset.pattern.permute.xlu0 0
        %520 = vperm.xlu0 %519, %v517
        %v521 = vpop.permute.xlu0 %520
        %vm523 = vcmask 326656
        %v525 = vsel %vm523, %v516, 0
        %527 = vmatpush.msra.mxu0 0.0
        %528 = vmatpush.msra.mxu0 0.0
        %529 = vmatpush.msra.mxu0 0.0
        %530 = vmatpush.msra.mxu0 0.0
        %531 = vmatpush.msra.mxu0 0.0
        %532 = vmatpush.msra.mxu0 0.0
        %533 = vmatpush.msra.mxu0 0.0
        %534 = vmatpush.msra.mxu0 0.0
        %535 = vmatpush.msra.mxu0 0.0
        %536 = vmatpush.msra.mxu0 0.0
        %537 = vmatpush.msra.mxu0 0.0
        %538 = vmatpush.msra.mxu0 %v449
        %539 = vmatpush.msra.mxu0 %v514
        %540 = vmatpush.msra.mxu0 %v498
        %541 = vmatpush.msra.mxu0 %v482
        %542 = vmatpush.msra.mxu0 %v466
        %543 = vmatmul.f32.gmra.mxu0 %v525
        %v544 = vpop.f32.mrf.mxu0
        %v545 = vadd.f32 %v521, %v544
        %546 = vdwg.mxu0
        %547 = vmatpush.msra.mxu0 0.0
        %548 = vmatpush.msra.mxu0 0.0
        %549 = vmatpush.msra.mxu0 0.0
        %550 = vmatpush.msra.mxu0 0.0
        %551 = vmatpush.msra.mxu0 0.0
        %552 = vmatpush.msra.mxu0 0.0
        %553 = vmatpush.msra.mxu0 0.0
        %554 = vmatpush.msra.mxu0 0.0
        %555 = vmatpush.msra.mxu0 0.0
        %556 = vmatpush.msra.mxu0 0.0
        %557 = vmatpush.msra.mxu0 0.0
        %558 = vmatpush.msra.mxu0 %v450
        %559 = vmatpush.msra.mxu0 %v515
        %560 = vmatpush.msra.mxu0 %v499
        %561 = vmatpush.msra.mxu0 %v483
        %562 = vmatpush.msra.mxu0 %v467
        %563 = vmatmul.f32.gmra.mxu0 %v525
        %v564 = vpop.f32.mrf.mxu0
        %v565 = vadd.f32 %v521, %v564
        %566 = vdwg.mxu0
        %v567 = vmax.f32 %v545, 0.0
        %v568 = vmax.f32 %v565, 0.0
        %v569 = vld [vmem:[%s8] sm:$0xff]
        %v570 = vld [vmem:[%s9] sm:$0xff]
        %572 = vset.pattern.permute.xlu0 0
        %573 = vperm.xlu0 %572, %v570
        %v574 = vpop.permute.xlu0 %573
        %v577 = vsel %vm405, %v569, 0
        %579 = vmatpush.msra.mxu0 0.0
        %580 = vmatpush.msra.mxu0 0.0
        %581 = vmatpush.msra.mxu0 0.0
        %582 = vmatpush.msra.mxu0 0.0
        %583 = vmatpush.msra.mxu0 0.0
        %584 = vmatpush.msra.mxu0 0.0
        %585 = vmatpush.msra.mxu0 0.0
        %586 = vmatpush.msra.mxu0 0.0
        %587 = vmatpush.msra.mxu0 0.0
        %588 = vmatpush.msra.mxu0 0.0
        %589 = vmatpush.msra.mxu0 0.0
        %590 = vmatpush.msra.mxu0 0.0
        %591 = vmatpush.msra.mxu0 0.0
        %592 = vmatpush.msra.mxu0 0.0
        %593 = vmatpush.msra.mxu0 0.0
        %594 = vmatpush.msra.mxu0 %v567
        %595 = vmatmul.f32.gmra.mxu0 %v577
        %v596 = vpop.f32.mrf.mxu0
        %v597 = vadd.f32 %v574, %v596
        %598 = vdwg.mxu0
        %599 = vmatpush.msra.mxu0 0.0
        %600 = vmatpush.msra.mxu0 0.0
        %601 = vmatpush.msra.mxu0 0.0
        %602 = vmatpush.msra.mxu0 0.0
        %603 = vmatpush.msra.mxu0 0.0
        %604 = vmatpush.msra.mxu0 0.0
        %605 = vmatpush.msra.mxu0 0.0
        %606 = vmatpush.msra.mxu0 0.0
        %607 = vmatpush.msra.mxu0 0.0
        %608 = vmatpush.msra.mxu0 0.0
        %609 = vmatpush.msra.mxu0 0.0
        %610 = vmatpush.msra.mxu0 0.0
        %611 = vmatpush.msra.mxu0 0.0
        %612 = vmatpush.msra.mxu0 0.0
        %613 = vmatpush.msra.mxu0 0.0
        %614 = vmatpush.msra.mxu0 %v568
        %615 = vmatmul.f32.gmra.mxu0 %v577
        %v616 = vpop.f32.mrf.mxu0
        %v617 = vadd.f32 %v574, %v616
        %618 = vdwg.mxu0
        %v619 = vadd.f32 %v597, %v378
        %v620 = vadd.f32 %v617, %v379
        %621 = vst [vmem:[%s377] sm:$0xff] %v619
        %622 = vst [vmem:[%s377 + $0x8] sm:$0xff] %v620
        %s623 = sand.u32 %s250, 1
        %s624 = scalar_lea.sflag [#allocation4], %s623
        %s625 = sand.u32 %s250, 1
        %s626 = smul.addr %s625, 16
        %s627 = scalar_lea.vmem [#allocation5], %s626
        // Predicated region
        $region65: #{tpu_custom_call.1} parent=59 // pred_check
          %p628 = pneg %p260
        $region66: #{tpu_custom_call.1} parent=59 // pred_check_branch
          %630 = sbr.rel (%p628) target = $region68
        $region67: #{tpu_custom_call.1} parent=59 // pred_region
          %632 = vsyncadd %s624, 0
          %s633 = smul.addr %s27, 2
          %s634 = smul.addr %s633, 8
          %s635 = scalar_lea.hbm %s10, %s634
          %s637 = sshll.u32 %s627, 4
          %s638 = int_to_ptr.vmem [resolvable:$true] %s637
          %s639 = sshll.u32 %s635, 4
          %s640 = int_to_ptr.hbm [resolvable:$true] %s639
          %642 = dma.vmem_to_hbm [thread:$0]  %s638, 256, %s640, %s624
        $region68: #{tpu_custom_call.1} parent=59 // pred_fallthru
          _
      $region60: #{tpu_custom_call.1} parent=5 // pred_fallthru
        _
      %p643 = scmp.le.s32.totalorder 2, %s22
      // Predicated region
      $region69: #{tpu_custom_call.1} parent=5 // pred_check
        %p644 = pneg %p643
      $region70: #{tpu_custom_call.1} parent=5 // pred_check_branch
        %646 = sbr.rel (%p644) target = $region72
      $region71: #{tpu_custom_call.1} parent=5 // pred_region
        %s647 = ssub.s32 %s22, 2
        // Predicated region
        $region73: #{tpu_custom_call.1} parent=71 // pred_check
          %p648 = pneg %p266
        $region74: #{tpu_custom_call.1} parent=71 // pred_check_branch
          %650 = sbr.rel (%p648) target = $region76
        $region75: #{tpu_custom_call.1} parent=71 // pred_region
          %s651 = sand.u32 %s251, 1
          %s652 = scalar_lea.sflag [#allocation4], %s651
          %s653 = sand.u32 %s251, 1
          %s654 = smul.addr %s653, 16
          %s655 = scalar_lea.vmem [#allocation5], %s654
          %657 = dma.done %s652, 256
        $region76: #{tpu_custom_call.1} parent=71 // pred_fallthru
          _
      $region72: #{tpu_custom_call.1} parent=5 // pred_fallthru
        _
    $region6: #{tpu_custom_call.1} parent=1 // loop_footer
      %s26 = sadd.s32 1, %s22
    $region7: #{tpu_custom_call.1} parent=1 // loop_footer_branch
      %21 = sbr.rel target = $region3
    $region8: #{tpu_custom_call.1} parent=1 // loop_exit
      _
    %658 = vsyncpa [#allocation3], 1
    %s659 = scalar_lea.sflag [#allocation3], 1
    %660 = vsyncpa %s659, 1
    %661 = vsyncpa [#allocation4], 1
    %s662 = scalar_lea.sflag [#allocation4], 1
    %663 = vsyncpa %s662, 1

</llo_original>
